<compile_context>
chip_gen: v7x
topology: tpu7x:2x2x1
jax: 0.10.0
libtpu: 0.0.40
codegen_flags: <defaults>
</compile_context>

<pallas_src>
import functools

import jax
import jax.numpy as jnp
from jax.experimental import pallas as pl
from jax.experimental.pallas import tpu as pltpu


def _round_up(x: int, m: int) -> int:
    return ((x + m - 1) // m) * m


def _normalize_kernel_p2(x_ref, o_ref):
    # p == 2 fast path: x * rsqrt(sum(x*x)).
    # VPU multiply + XLU lane-reduce + EUP rsqrt — all hidden under the HBM
    # roofline for this memory-bound op.
    x = x_ref[...]
    xf = x if x.dtype == jnp.float32 else x.astype(jnp.float32)
    s = jnp.sum(xf * xf, axis=1, keepdims=True)            # (tile_m, 1)
    o_ref[...] = (xf * jax.lax.rsqrt(s)).astype(o_ref.dtype)


def _normalize_kernel_generic(x_ref, o_ref, *, power: float):
    # Generic p (matches PyTorch x.pow(p) semantics, incl. NaN for negative
    # base with non-integer p).  Small integer p stays on the VPU via repeated
    # multiplies; the final exponent and reciprocal are folded into a single
    # exact s**(-1/p) on the tiny (tile_m, 1) vector.
    x = x_ref[...].astype(jnp.float32)
    p_int = int(power)
    if float(p_int) == float(power) and 1 <= p_int <= 4:
        xp = x
        for _ in range(p_int - 1):
            xp = xp * x
    else:
        xp = jnp.power(x, power)
    s = jnp.sum(xp, axis=1, keepdims=True)                  # (tile_m, 1)
    inv_norm = jnp.power(s, -1.0 / power)
    o_ref[...] = (x * inv_norm).astype(o_ref.dtype)


def normalize(x: jax.Array, power: float = 2.0) -> jax.Array:
    """L_p-normalize each row of an (N, D) array (PyTorch `Normalize` forward)."""
    N, D = x.shape
    itemsize = jnp.dtype(x.dtype).itemsize
    sublane_pack = {4: 8, 2: 16, 1: 32}.get(itemsize, 8)

    # VMEM-capacity-aware tile budget: large tiles on v5e/v6e (128 MiB VMEM),
    # tighter on v7x (64 MiB per TensorCore).
    try:
        vmem_cap = int(pltpu.get_tpu_info().vmem_capacity_bytes)
    except Exception:
        vmem_cap = 64 << 20  # conservative (v7x-sized) fallback
    if vmem_cap >= (100 << 20):          # v5e / v6e
        buf_budget, row_cap = 16 << 20, 16384
    else:                                # v7x
        buf_budget, row_cap = 6 << 20, 4096

    row_bytes = D * itemsize
    if sublane_pack * row_bytes > buf_budget:
        # TODO(synk): D-chunked two-pass reduction for extremely wide rows.
        raise NotImplementedError(
            f"feature dim D={D} too wide for a single-pass VMEM tile")

    # Largest row-tile that fits the per-buffer budget (multiple of the
    # dtype sublane pack).
    cap = max(sublane_pack, (buf_budget // row_bytes) // sublane_pack * sublane_pack)
    # At least two grid tiles whenever N allows, so the "parallel" axis shards
    # across both v7x TensorCores (harmless on single-TC v5e/v6e).
    half = _round_up(pl.cdiv(N, 2), sublane_pack)
    tile_m = max(sublane_pack, min(cap, row_cap, half))
    if tile_m >= N:
        # Single block covering the whole array — full-array dims are exempt
        # from the (8, 128) divisibility rule.
        tile_m = N
    grid_m = pl.cdiv(N, tile_m)

    # 2 arrays (input + output), double-buffered, plus headroom; stay inside
    # the physical VMEM of the current chip.
    tile_bytes = tile_m * row_bytes
    vmem_limit = int(min(max(4 * tile_bytes + (8 << 20), 32 << 20),
                         vmem_cap - (8 << 20)))

    if float(power) == 2.0:
        kernel = _normalize_kernel_p2
    else:
        kernel = functools.partial(_normalize_kernel_generic, power=float(power))

    # Note: no wrapper pad or output slice — the block's last dim is the full
    # D, and out-of-bounds rows of a partial boundary block are discarded on
    # write (rows are independent, so their garbage/NaN values never land).
    return pl.pallas_call(
        kernel,
        out_shape=jax.ShapeDtypeStruct((N, D), x.dtype),
        grid_spec=pltpu.PrefetchScalarGridSpec(
            num_scalar_prefetch=0,
            grid=(grid_m,),
            in_specs=[pl.BlockSpec((tile_m, D), lambda i: (i, 0))],
            out_specs=pl.BlockSpec((tile_m, D), lambda i: (i, 0)),
        ),
        compiler_params=pltpu.CompilerParams(
            dimension_semantics=("parallel",),
            vmem_limit_bytes=vmem_limit,
        ),
    )(x)


def normalize_ref(x: jax.Array, power: float = 2.0) -> jax.Array:
    # Pure-JAX reference mirroring the PyTorch module exactly.
    norm = jnp.power(jnp.sum(jnp.power(x, power), axis=1, keepdims=True), 1.0 / power)
    return x / norm


if __name__ == "__main__":
    key = jax.random.PRNGKey(0)
    k1, k2, k3, k4 = jax.random.split(key, 4)

    # MoCo's l2norm is applied to (batch, low_dim=128) embeddings.
    x = jax.random.normal(k1, (8, 128), dtype=jnp.float32)
    out = jax.block_until_ready(normalize(x, power=2.0))
    ref = normalize_ref(x, power=2.0)
    assert out.shape == x.shape and out.dtype == x.dtype
    assert jnp.allclose(out, ref, atol=1e-5, rtol=1e-4), "mismatch (aligned p=2)"

    # Non-aligned shape (N not a multiple of 8, D not a multiple of 128):
    # single full-array block, no wrapper pad/slice.
    x2 = jax.random.normal(k2, (5, 96), dtype=jnp.float32)
    out2 = jax.block_until_ready(normalize(x2, power=2.0))
    assert out2.shape == x2.shape
    assert jnp.allclose(out2, normalize_ref(x2, power=2.0), atol=1e-5, rtol=1e-4), \
        "mismatch (non-aligned p=2)"

    # Multi-tile path with a partial (masked-on-write) boundary block.
    x3 = jax.random.normal(k3, (20, 128), dtype=jnp.float32)
    out3 = jax.block_until_ready(normalize(x3, power=2.0))
    assert jnp.allclose(out3, normalize_ref(x3, power=2.0), atol=1e-5, rtol=1e-4), \
        "mismatch (partial boundary block)"

    # Generic-p path (p=3, positive inputs so the reference norm is finite).
    x4 = jnp.abs(jax.random.normal(k4, (8, 128), dtype=jnp.float32)) + 0.1
    out4 = jax.block_until_ready(normalize(x4, power=3.0))
    assert jnp.allclose(out4, normalize_ref(x4, power=3.0), atol=1e-5, rtol=1e-4), \
        "mismatch (generic p=3)"

    print("KERNEL_OK")
</pallas_src>

<mosaic_0001>
module attributes {stable_mosaic.version = 11 : i64} {
  func.func @_normalize_kernel_p2(%arg0: i32, %arg1: memref<8x128xf32, #tpu.memory_space<vmem>>, %arg2: memref<8x128xf32, #tpu.memory_space<vmem>>) attributes {dimension_semantics = [#tpu.dimension_semantics<parallel>], iteration_bounds = array<i64: 1>, scalar_prefetch = 0 : i64, scratch_operands = 0 : i64, tpu.core_type = #tpu.core_type<tc>, window_params = [{transform_indices = @transform_0, window_bounds = array<i64: 8, 128>}, {transform_indices = @transform_1, window_bounds = array<i64: 8, 128>}]} {
    %c0 = arith.constant 0 : index
    %c0_0 = arith.constant 0 : index
    %0 = vector.load %arg1[%c0, %c0_0] : memref<8x128xf32, #tpu.memory_space<vmem>>, vector<8x128xf32>
    %1 = arith.mulf %0, %0 : vector<8x128xf32>
    %cst = arith.constant dense<0.000000e+00> : vector<8xf32>
    %2 = vector.multi_reduction <add>, %1, %cst [1] : vector<8x128xf32> to vector<8xf32>
    %3 = vector.shape_cast %2 : vector<8xf32> to vector<8x1xf32>
    %4 = math.rsqrt %3 : vector<8x1xf32>
    %5 = vector.broadcast %4 : vector<8x1xf32> to vector<8x128xf32>
    %6 = arith.mulf %0, %5 : vector<8x128xf32>
    %c0_1 = arith.constant 0 : index
    %c0_2 = arith.constant 0 : index
    %7 = vector.load %arg2[%c0_1, %c0_2] : memref<8x128xf32, #tpu.memory_space<vmem>>, vector<8x128xf32>
    tpu.vector_store %arg2[%c0_1, %c0_2], %6 {strides = array<i32>} : memref<8x128xf32, #tpu.memory_space<vmem>>, vector<8x128xf32>,
    return
  }
  func.func @transform_0(%arg0: i32) -> (i32, i32) {
    %c0_i32 = arith.constant 0 : i32
    %c0_i32_0 = arith.constant 0 : i32
    return %arg0, %c0_i32 : i32, i32
  }
  func.func @transform_1(%arg0: i32) -> (i32, i32) {
    %c0_i32 = arith.constant 0 : i32
    %c0_i32_0 = arith.constant 0 : i32
    return %arg0, %c0_i32 : i32, i32
  }
}

</mosaic_0001>

<llo_original>
// kernel: tpu_custom_call.1
$region0: #{tpu_custom_call.1}
  #allocation0 [shape = 'u32[]', space=smem, size = 0x4, offset = 0x4, fixed_abs, tag = 'smem constant byte address 0x4 - core index']
  #allocation1 [shape = 'u32[144,128]{1,0:T(1,128)}', space=vmem, size = 0x12000, scoped, tag = 'internal scratch']
  %s0 = inlined_call_operand.hbm [shape: f32[8,128], index: 0, kind: input, shape index: {}]
  %s1 = inlined_call_operand.hbm [shape: f32[8,128], index: 1, kind: output, shape index: {}]
  %s2 = sld [smem:[#allocation0]]
  $region18: #{tpu_custom_call.1} parent=0
    _
  %s4 = ssub.s32 1, %s2
  %s5 = scalar_select 0, %s4, %s2
  $region1: #{tpu_custom_call.1} parent=0
    #allocation2 [shape = 'u8[4096]{0}', space=vmem, size = 0x1000, scoped, tag = 'input window, operand 0, single buffered']
    #allocation3 [shape = 's32[1]{0}', space=sflag, size = 0x4, scoped, tag = 'scoped memory for tpu_custom_call.1']
    #allocation4 [shape = 's32[1]{0}', space=sflag, size = 0x4, scoped, tag = 'scoped memory for tpu_custom_call.1']
    #allocation5 [shape = 'u8[4096]{0}', space=vmem, size = 0x1000, scoped, tag = 'output window, operand 0, single buffered']
    %6 = vsyncpa [#allocation3], 0
    %7 = vsyncpa [#allocation4], 0
    // Predicated region
    $region2: #{tpu_custom_call.1} parent=1 // pred_check
      _
    $region3: #{tpu_custom_call.1} parent=1 // pred_check_branch
      %9 = sbr.rel (0) target = $region5
    $region4: #{tpu_custom_call.1} parent=1 // pred_region
      %s11 = ssub.s32 128, 128
      %12 = vsyncadd [#allocation3], %s11
      %s14 = sshll.u32 [#allocation2], 4
      %s15 = int_to_ptr.vmem [resolvable:$true] %s14
      %17 = dma.hbm_to_vmem [thread:$0]  %s0, 128, %s15, [#allocation3]
    $region5: #{tpu_custom_call.1} parent=1 // pred_fallthru
      _
    // Predicated region
    $region6: #{tpu_custom_call.1} parent=1 // pred_check
      _
    $region7: #{tpu_custom_call.1} parent=1 // pred_check_branch
      %19 = sbr.rel (0) target = $region9
    $region8: #{tpu_custom_call.1} parent=1 // pred_region
      %20 = dma.done [#allocation3], 128
    $region9: #{tpu_custom_call.1} parent=1 // pred_fallthru
      _
    %v21 = vld [vmem:[#allocation2] sm:$0xff]
    %v22 = vmul.f32 %v21, %v21
    %23 = vadd.xlane.f32.xlu0 %v22
    %v24 = vpop.xlane.xlu0 %23
    %v25 = vrsqrt.pop %v24
    %v26 = vmul.f32 %v21, %v25
    %27 = vst [vmem:[#allocation5] sm:$0xff] %v26
    // Predicated region
    $region10: #{tpu_custom_call.1} parent=1 // pred_check
      _
    $region11: #{tpu_custom_call.1} parent=1 // pred_check_branch
      %29 = sbr.rel (0) target = $region13
    $region12: #{tpu_custom_call.1} parent=1 // pred_region
      %s31 = ssub.s32 128, 128
      %32 = vsyncadd [#allocation4], %s31
      %s34 = sshll.u32 [#allocation5], 4
      %s35 = int_to_ptr.vmem [resolvable:$true] %s34
      %37 = dma.vmem_to_hbm [thread:$0]  %s35, 128, %s1, [#allocation4]
    $region13: #{tpu_custom_call.1} parent=1 // pred_fallthru
      _
    // Predicated region
    $region14: #{tpu_custom_call.1} parent=1 // pred_check
      _
    $region15: #{tpu_custom_call.1} parent=1 // pred_check_branch
      %39 = sbr.rel (0) target = $region17
    $region16: #{tpu_custom_call.1} parent=1 // pred_region
      %40 = dma.done [#allocation4], 128
    $region17: #{tpu_custom_call.1} parent=1 // pred_fallthru
      _
    %41 = vsyncpa [#allocation3], 1
    %42 = vsyncpa [#allocation4], 1

</llo_original>
